<compile_context>
chip_gen: v6e
topology: v6e:2x2x1
jax: 0.10.0
libtpu: 0.0.40
codegen_flags: <defaults>
</compile_context>

<pallas_src>
import functools

import jax
import jax.numpy as jnp
from jax.experimental import pallas as pl
from jax.experimental.pallas import tpu as pltpu


# ---------------------------------------------------------------------------
# Kernel
# ---------------------------------------------------------------------------
def euler_reservoir_kernel(x_ref, s_ref, w_in_ref, b_in_ref, w_k_ref, w_rec_ref,
                           out_ref):
    """Grid axis 0 tiles the F (reduction) dim of x @ W_in^T.

    x_ref     : (B, TK)  f32   tile k of the inputs (streamed)
    s_ref     : (B, U)   f32   states (VMEM-resident, constant index)
    w_in_ref  : (TK, U)  bf16  tile k of W_in^T (streamed)
    b_in_ref  : (1, U)   f32   bias (resident)
    w_k_ref   : (U, U)   bf16  W_k^T (resident)
    w_rec_ref : (U, U)   bf16  W_rec^T (resident)
    out_ref   : (B, U)   f32   output block; doubles as the f32 accumulator
                               (constant index map -> VMEM-resident across K)
    """
    k = pl.program_id(0)

    @pl.when(k == 0)
    def _init():
        out_ref[...] = jnp.zeros_like(out_ref)

    # K-tiled input projection on the MXU: bf16 operands, f32 accumulation,
    # accumulated directly into the resident f32 output block (no scratch).
    out_ref[...] += jnp.dot(
        x_ref[...].astype(w_in_ref.dtype), w_in_ref[...],
        preferred_element_type=jnp.float32)

    @pl.when(k == pl.num_programs(0) - 1)
    def _finalize():
        u = jnp.tanh(out_ref[...] + b_in_ref[...])            # (B, U) f32
        s = s_ref[...]                                          # (B, U) f32
        net = (jnp.dot(u.astype(w_k_ref.dtype), w_k_ref[...],
                       preferred_element_type=jnp.float32)
               + jnp.dot(s.astype(w_rec_ref.dtype), w_rec_ref[...],
                         preferred_element_type=jnp.float32))   # (B, U) f32
        out_ref[...] = s + 0.01 * jnp.tanh(net)


# ---------------------------------------------------------------------------
# TK selection + one-time weight preprocessing (outside jit)
# ---------------------------------------------------------------------------
def choose_tk(input_size, tk_max=1024):
    """Largest multiple of 128 <= tk_max that divides F exactly; else fall back.

    Real model: F = 32*14*14 = 6272 = 49*128 -> TK = 896 (7 exact blocks).
    """
    if input_size <= tk_max:
        return input_size                      # single full-extent block
    for m in range(tk_max // 128, 0, -1):
        tk = m * 128
        if input_size % tk == 0:
            return tk
    return tk_max                              # needs padding (handled below)


def prepare_params(w_in_t, b_in, w_k_t, w_rec_t, *, tk,
                   weight_dtype=jnp.bfloat16):
    """One-time preprocessing: pad W_in^T to a multiple of TK and cast weights
    to bf16. Runs once at init, NOT per call."""
    f = w_in_t.shape[0]
    f_pad = pl.cdiv(f, tk) * tk
    if f_pad != f:
        # Zero rows of W_in^T contribute nothing to x @ W_in^T.
        w_in_t = jnp.pad(w_in_t, ((0, f_pad - f), (0, 0)))
    return (
        w_in_t.astype(weight_dtype),                    # (F_pad, U) bf16
        b_in.reshape(1, -1).astype(jnp.float32),        # (1, U)     f32
        w_k_t.astype(weight_dtype),                     # (U, U)     bf16
        w_rec_t.astype(weight_dtype),                   # (U, U)     bf16
    )


# ---------------------------------------------------------------------------
# Jitted wrapper (no weight copies inside)
# ---------------------------------------------------------------------------
@functools.partial(jax.jit, static_argnames=("tk",))
def euler_reservoir_cell(inputs, states, w_in_p, b_in_p, w_k_p, w_rec_p, *, tk):
    """inputs: (B, F) f32, states: (B, U) f32; weights pre-processed via
    prepare_params (pre-padded, pre-transposed to x@W form, bf16)."""
    B, F = inputs.shape
    U = states.shape[1]
    f_pad = w_in_p.shape[0]
    if f_pad != F:
        # Only the tiny (B, pad) activation slab is padded per call.
        inputs = jnp.pad(inputs, ((0, 0), (0, f_pad - F)))
    n_k = f_pad // tk

    out = pl.pallas_call(
        euler_reservoir_kernel,
        out_shape=jax.ShapeDtypeStruct((B, U), jnp.float32),
        grid_spec=pltpu.PrefetchScalarGridSpec(
            num_scalar_prefetch=0,
            grid=(n_k,),
            in_specs=[
                pl.BlockSpec((B, tk), lambda k: (0, k)),      # x tile (streamed)
                pl.BlockSpec((B, U), lambda k: (0, 0)),       # states (resident)
                pl.BlockSpec((tk, U), lambda k: (k, 0)),      # W_in^T tile (streamed)
                pl.BlockSpec((1, U), lambda k: (0, 0)),       # b_in (resident)
                pl.BlockSpec((U, U), lambda k: (0, 0)),       # W_k^T (resident)
                pl.BlockSpec((U, U), lambda k: (0, 0)),       # W_rec^T (resident)
            ],
            out_specs=pl.BlockSpec((B, U), lambda k: (0, 0)),  # lane-dense, resident
        ),
        compiler_params=pltpu.CompilerParams(
            dimension_semantics=("arbitrary",),                # K is a reduction
            vmem_limit_bytes=32 * 1024 * 1024,
        ),
    )(inputs, states, w_in_p, b_in_p, w_k_p, w_rec_p)

    # The module returns (output, output) — mirror that.
    return out, out


# ---------------------------------------------------------------------------
# Parameter init mirroring the PyTorch module, and an f32 reference
# ---------------------------------------------------------------------------
def init_params(key, input_size, units):
    k1, k2, k3, k4 = jax.random.split(key, 4)

    # nn.Linear(input_size, units): weight (units, input_size), bias (units,)
    bound_in = 1.0 / jnp.sqrt(float(input_size))
    w_in = jax.random.uniform(k1, (units, input_size), jnp.float32, -bound_in, bound_in)
    b_in = jax.random.uniform(k2, (units,), jnp.float32, -bound_in, bound_in)

    # nn.Linear(units, units, bias=False)
    bound_u = 1.0 / jnp.sqrt(float(units))
    w_k = jax.random.uniform(k3, (units, units), jnp.float32, -bound_u, bound_u)

    # recurrent: kaiming_normal_ then antisymmetrized: W = (W - W^T) * 0.5
    std = jnp.sqrt(2.0 / float(units))
    w_rec = jax.random.normal(k4, (units, units), jnp.float32) * std
    w_rec = (w_rec - w_rec.T) * 0.5

    # Pre-transpose so the kernel computes x @ W (== x @ W_torch^T).
    return w_in.T, b_in, w_k.T, w_rec.T


def reference(inputs, states, w_in_t, b_in, w_k_t, w_rec_t):
    u = jnp.tanh(inputs @ w_in_t + b_in.reshape(1, -1))
    net = u @ w_k_t + states @ w_rec_t
    return states + 0.01 * jnp.tanh(net)


if __name__ == "__main__":
    # Small shapes consistent with the module (real input_size is 32*14*14 =
    # 6272 = 49*128; scaled down here while keeping the same 128-divisibility
    # structure). B multiple of 8, U multiple of 128.
    B, F, U = 8, 1792, 128          # F = 14*128 -> TK = 896, 2 exact K blocks
    TK = choose_tk(F)               # 896 here; also 896 for the real F = 6272

    key = jax.random.PRNGKey(0)
    kx, ks, kp = jax.random.split(key, 3)

    inputs = jax.random.normal(kx, (B, F), jnp.float32)
    states = jax.random.normal(ks, (B, U), jnp.float32)
    w_in_t, b_in, w_k_t, w_rec_t = init_params(kp, F, U)

    # One-time weight preprocessing (pad + bf16 cast) outside the jitted call.
    w_in_p, b_in_p, w_k_p, w_rec_p = prepare_params(
        w_in_t, b_in, w_k_t, w_rec_t, tk=TK)

    out, out2 = euler_reservoir_cell(
        inputs, states, w_in_p, b_in_p, w_k_p, w_rec_p, tk=TK)
    out = jax.block_until_ready(out)

    # f32 reference; tolerances loosened because weights are stored in bf16.
    ref = reference(inputs, states, w_in_t, b_in, w_k_t, w_rec_t)
    assert out.shape == (B, U)
    assert jnp.allclose(out, ref, atol=1e-3, rtol=1e-2), "mismatch vs reference"
    assert jnp.allclose(out2, ref, atol=1e-3, rtol=1e-2), "second output mismatch"

    print("KERNEL_OK")
</pallas_src>

<mosaic_0001>
module attributes {stable_mosaic.version = 11 : i64} {
  func.func @euler_reservoir_kernel(%arg0: i32, %arg1: memref<8x896xf32, #tpu.memory_space<vmem>>, %arg2: memref<8x128xf32, #tpu.memory_space<vmem>>, %arg3: memref<896x128xbf16, #tpu.memory_space<vmem>>, %arg4: memref<1x128xf32, #tpu.memory_space<vmem>>, %arg5: memref<128x128xbf16, #tpu.memory_space<vmem>>, %arg6: memref<128x128xbf16, #tpu.memory_space<vmem>>, %arg7: memref<8x128xf32, #tpu.memory_space<vmem>>) attributes {dimension_semantics = [#tpu.dimension_semantics<arbitrary>], iteration_bounds = array<i64: 2>, scalar_prefetch = 0 : i64, scratch_operands = 0 : i64, tpu.core_type = #tpu.core_type<tc>, window_params = [{transform_indices = @transform_0, window_bounds = array<i64: 8, 896>}, {pipeline_mode = #tpu.pipeline_mode<synchronous>, transform_indices = @transform_1, window_bounds = array<i64: 8, 128>}, {transform_indices = @transform_2, window_bounds = array<i64: 896, 128>}, {pipeline_mode = #tpu.pipeline_mode<synchronous>, transform_indices = @transform_3, window_bounds = array<i64: 1, 128>}, {pipeline_mode = #tpu.pipeline_mode<synchronous>, transform_indices = @transform_4, window_bounds = array<i64: 128, 128>}, {pipeline_mode = #tpu.pipeline_mode<synchronous>, transform_indices = @transform_5, window_bounds = array<i64: 128, 128>}, {pipeline_mode = #tpu.pipeline_mode<synchronous>, transform_indices = @transform_6, window_bounds = array<i64: 8, 128>}]} {
    %c0_i32 = arith.constant 0 : i32
    %0 = arith.cmpi eq, %arg0, %c0_i32 : i32
    %1 = arith.extui %0 : i1 to i32
    %c0_i32_0 = arith.constant 0 : i32
    %2 = arith.cmpi ne, %1, %c0_i32_0 : i32
    scf.if %2 {
      %cst_9 = arith.constant 0.000000e+00 : f32
      %13 = vector.broadcast %cst_9 : f32 to vector<8x128xf32>
      %c0_10 = arith.constant 0 : index
      %c0_11 = arith.constant 0 : index
      %14 = vector.load %arg7[%c0_10, %c0_11] : memref<8x128xf32, #tpu.memory_space<vmem>>, vector<8x128xf32>
      tpu.vector_store %arg7[%c0_10, %c0_11], %13 {strides = array<i32>} : memref<8x128xf32, #tpu.memory_space<vmem>>, vector<8x128xf32>,
    } else {
    }
    %c0 = arith.constant 0 : index
    %c0_1 = arith.constant 0 : index
    %3 = vector.load %arg7[%c0, %c0_1] : memref<8x128xf32, #tpu.memory_space<vmem>>, vector<8x128xf32>
    %c0_2 = arith.constant 0 : index
    %c0_3 = arith.constant 0 : index
    %4 = vector.load %arg1[%c0_2, %c0_3] : memref<8x896xf32, #tpu.memory_space<vmem>>, vector<8x896xf32>
    %5 = arith.truncf %4 : vector<8x896xf32> to vector<8x896xbf16>
    %c0_4 = arith.constant 0 : index
    %c0_5 = arith.constant 0 : index
    %6 = vector.load %arg3[%c0_4, %c0_5] : memref<896x128xbf16, #tpu.memory_space<vmem>>, vector<896x128xbf16>
    %cst = arith.constant dense<0.000000e+00> : vector<8x128xf32>
    %7 = tpu.matmul %5, %6, %cst {dimension_numbers = #tpu.dot_dimension_numbers<[1], [0], [0], [1], [0, 0, 1, 1], [], []>} : vector<8x896xbf16>, vector<896x128xbf16>, vector<8x128xf32> -> vector<8x128xf32>
    %8 = arith.addf %3, %7 : vector<8x128xf32>
    %c0_6 = arith.constant 0 : index
    %c0_7 = arith.constant 0 : index
    %9 = vector.load %arg7[%c0_6, %c0_7] : memref<8x128xf32, #tpu.memory_space<vmem>>, vector<8x128xf32>
    tpu.vector_store %arg7[%c0_6, %c0_7], %8 {strides = array<i32>} : memref<8x128xf32, #tpu.memory_space<vmem>>, vector<8x128xf32>,
    %c1_i32 = arith.constant 1 : i32
    %10 = arith.cmpi eq, %arg0, %c1_i32 : i32
    %11 = arith.extui %10 : i1 to i32
    %c0_i32_8 = arith.constant 0 : i32
    %12 = arith.cmpi ne, %11, %c0_i32_8 : i32
    scf.if %12 {
      %c0_9 = arith.constant 0 : index
      %c0_10 = arith.constant 0 : index
      %13 = vector.load %arg7[%c0_9, %c0_10] : memref<8x128xf32, #tpu.memory_space<vmem>>, vector<8x128xf32>
      %c0_11 = arith.constant 0 : index
      %c0_12 = arith.constant 0 : index
      %14 = vector.load %arg4[%c0_11, %c0_12] : memref<1x128xf32, #tpu.memory_space<vmem>>, vector<1x128xf32>
      %15 = vector.broadcast %14 : vector<1x128xf32> to vector<8x128xf32>
      %16 = arith.addf %13, %15 : vector<8x128xf32>
      %17 = math.tanh %16 : vector<8x128xf32>
      %c0_13 = arith.constant 0 : index
      %c0_14 = arith.constant 0 : index
      %18 = vector.load %arg2[%c0_13, %c0_14] : memref<8x128xf32, #tpu.memory_space<vmem>>, vector<8x128xf32>
      %19 = arith.truncf %17 : vector<8x128xf32> to vector<8x128xbf16>
      %c0_15 = arith.constant 0 : index
      %c0_16 = arith.constant 0 : index
      %20 = vector.load %arg5[%c0_15, %c0_16] : memref<128x128xbf16, #tpu.memory_space<vmem>>, vector<128x128xbf16>
      %cst_17 = arith.constant dense<0.000000e+00> : vector<8x128xf32>
      %21 = tpu.matmul %19, %20, %cst_17 {dimension_numbers = #tpu.dot_dimension_numbers<[1], [0], [0], [1], [0, 0, 1, 1], [], []>} : vector<8x128xbf16>, vector<128x128xbf16>, vector<8x128xf32> -> vector<8x128xf32>
      %22 = arith.truncf %18 : vector<8x128xf32> to vector<8x128xbf16>
      %c0_18 = arith.constant 0 : index
      %c0_19 = arith.constant 0 : index
      %23 = vector.load %arg6[%c0_18, %c0_19] : memref<128x128xbf16, #tpu.memory_space<vmem>>, vector<128x128xbf16>
      %cst_20 = arith.constant dense<0.000000e+00> : vector<8x128xf32>
      %24 = tpu.matmul %22, %23, %cst_20 {dimension_numbers = #tpu.dot_dimension_numbers<[1], [0], [0], [1], [0, 0, 1, 1], [], []>} : vector<8x128xbf16>, vector<128x128xbf16>, vector<8x128xf32> -> vector<8x128xf32>
      %25 = arith.addf %21, %24 : vector<8x128xf32>
      %26 = math.tanh %25 : vector<8x128xf32>
      %cst_21 = arith.constant 0.00999999977 : f32
      %27 = vector.broadcast %cst_21 : f32 to vector<8x128xf32>
      %28 = arith.mulf %27, %26 : vector<8x128xf32>
      %29 = arith.addf %18, %28 : vector<8x128xf32>
      %c0_22 = arith.constant 0 : index
      %c0_23 = arith.constant 0 : index
      %30 = vector.load %arg7[%c0_22, %c0_23] : memref<8x128xf32, #tpu.memory_space<vmem>>, vector<8x128xf32>
      tpu.vector_store %arg7[%c0_22, %c0_23], %29 {strides = array<i32>} : memref<8x128xf32, #tpu.memory_space<vmem>>, vector<8x128xf32>,
    } else {
    }
    return
  }
  func.func @transform_0(%arg0: i32) -> (i32, i32) {
    %c0_i32 = arith.constant 0 : i32
    %c0_i32_0 = arith.constant 0 : i32
    return %c0_i32, %arg0 : i32, i32
  }
  func.func @transform_1(%arg0: i32) -> (i32, i32) {
    %c0_i32 = arith.constant 0 : i32
    %c0_i32_0 = arith.constant 0 : i32
    %c0_i32_1 = arith.constant 0 : i32
    return %c0_i32, %c0_i32_0 : i32, i32
  }
  func.func @transform_2(%arg0: i32) -> (i32, i32) {
    %c0_i32 = arith.constant 0 : i32
    %c0_i32_0 = arith.constant 0 : i32
    return %arg0, %c0_i32 : i32, i32
  }
  func.func @transform_3(%arg0: i32) -> (i32, i32) {
    %c0_i32 = arith.constant 0 : i32
    %c0_i32_0 = arith.constant 0 : i32
    %c0_i32_1 = arith.constant 0 : i32
    return %c0_i32, %c0_i32_0 : i32, i32
  }
  func.func @transform_4(%arg0: i32) -> (i32, i32) {
    %c0_i32 = arith.constant 0 : i32
    %c0_i32_0 = arith.constant 0 : i32
    %c0_i32_1 = arith.constant 0 : i32
    return %c0_i32, %c0_i32_0 : i32, i32
  }
  func.func @transform_5(%arg0: i32) -> (i32, i32) {
    %c0_i32 = arith.constant 0 : i32
    %c0_i32_0 = arith.constant 0 : i32
    %c0_i32_1 = arith.constant 0 : i32
    return %c0_i32, %c0_i32_0 : i32, i32
  }
  func.func @transform_6(%arg0: i32) -> (i32, i32) {
    %c0_i32 = arith.constant 0 : i32
    %c0_i32_0 = arith.constant 0 : i32
    %c0_i32_1 = arith.constant 0 : i32
    return %c0_i32, %c0_i32_0 : i32, i32
  }
}

</mosaic_0001>

<llo_original>
// kernel: euler_reservoir_cell.1
$region0: #{euler_reservoir_cell.1}
  #allocation0 [shape = 'u32[]', space=smem, size = 0x4, offset = 0x4, fixed_abs, tag = 'smem constant byte address 0x4 - core index']
  #allocation1 [shape = 'u32[144,128]{1,0:T(1,128)}', space=vmem, size = 0x12000, scoped, tag = 'internal scratch']
  %s0 = inlined_call_operand.hbm [shape: f32[8,1792], index: 0, kind: input, shape index: {}]
  %s1 = inlined_call_operand.hbm [shape: f32[8,128], index: 1, kind: input, shape index: {}]
  %s2 = inlined_call_operand.hbm [shape: bf16[1792,128], index: 2, kind: input, shape index: {}]
  %s3 = inlined_call_operand.vmem [shape: f32[1,128], index: 3, kind: input, shape index: {}]
  %s4 = inlined_call_operand.hbm [shape: bf16[128,128], index: 4, kind: input, shape index: {}]
  %s5 = inlined_call_operand.hbm [shape: bf16[128,128], index: 5, kind: input, shape index: {}]
  %s6 = inlined_call_operand.vmem [shape: f32[8,128], index: 6, kind: output, shape index: {}]
  %s7 = sld [smem:[#allocation0]]
  $region85: #{euler_reservoir_cell.1} parent=0
    _
  %s9 = ssub.s32 1, %s7
  %s10 = scalar_select 0, %s9, %s7
  $region1: #{euler_reservoir_cell.1} parent=0
    #allocation2 [shape = 'u8[57344]{0}', space=vmem, size = 0xe000, scoped, tag = 'input window, operand 0']
    #allocation3 [shape = 's32[2]{0}', space=sflag, size = 0x8, scoped, tag = 'scoped memory for euler_reservoir_cell.1']
    #allocation4 [shape = 'u8[4096]{0}', space=vmem, size = 0x1000, scoped, tag = 'input window, operand 1, single buffered']
    #allocation5 [shape = 's32[1]{0}', space=sflag, size = 0x4, scoped, tag = 'scoped memory for euler_reservoir_cell.1']
    #allocation6 [shape = 'u8[458752]{0}', space=vmem, size = 0x70000, scoped, tag = 'input window, operand 2']
    #allocation7 [shape = 'u8[32768]{0}', space=vmem, size = 0x8000, scoped, tag = 'input window, operand 4, single buffered']
    #allocation8 [shape = 'u8[32768]{0}', space=vmem, size = 0x8000, scoped, tag = 'input window, operand 5, single buffered']
    #allocation9 [shape = 's32[1]{0}', space=sflag, size = 0x4, scoped, tag = 'scoped memory for euler_reservoir_cell.1']
    %11 = vsyncpa [#allocation3], 0
    %s12 = scalar_lea.sflag [#allocation3], 1
    %13 = vsyncpa %s12, 0
    %14 = vsyncpa [#allocation5], 0
    %15 = vsyncpa [#allocation9], 0
    loop: start=0, step=1, limit=4
    $region2: #{euler_reservoir_cell.1} parent=1 // loop_pre_header
      _
    $region3: #{euler_reservoir_cell.1} parent=1 // loop_header
      %s17 = sphi 0, %s21
      %p18 = scmp.ge.s32.totalorder %s17, 4
      %s27 = sphi 0, %s29
      %s30 = sphi 0, %s27
      %s31 = sphi 0, %s30
      %s47 = sphi 0, %s31
      %s51 = sphi 0, %s51
      %s53 = sphi 0, %s51
      %s54 = sphi 0, %s53
      %s68 = sphi 0, %s54
      %s74 = sphi 0, %s76
      %s77 = sphi 0, %s74
      %s78 = sphi 0, %s77
      %s94 = sphi 0, %s78
      %s98 = sphi 0, %s98
      %s100 = sphi 0, %s98
      %s101 = sphi 0, %s100
      %s115 = sphi 0, %s101
      %s119 = sphi 0, %s119
      %s121 = sphi 0, %s119
      %s122 = sphi 0, %s121
      %s136 = sphi 0, %s122
      %s140 = sphi 0, %s140
      %s142 = sphi 0, %s140
      %s143 = sphi 0, %s142
      %s157 = sphi 0, %s143
      %s161 = sphi 0, %s161
      %s163 = sphi 0, %s161
      %s164 = sphi 0, %s163
      %s178 = sphi 0, %s164
    $region4: #{euler_reservoir_cell.1} parent=1 // loop_header_branch
      %20 = sbr.rel (%p18) target = $region8
    $region5: #{euler_reservoir_cell.1} parent=1 // loop_body
      %s22 = ssub.s32 %s17, 1
      %s23 = ssub.s32 %s17, 2
      %s24 = sadd.s32 %s17, 1
      %s25 = ssub.s32 %s17, %s24
      %p26 = scmp.eq.s32.totalorder %s25, 0
      %s28 = sadd.s32 %s27, 1
      %s29 = scalar_select %p26, %s27, %s28
      %p32 = pneg %p26
      %p33 = scmp.eq.s32.totalorder %s17, 1
      %p34 = por %p32, %p33
      %p35 = scmp.ne.s32.totalorder %s27, %s30
      %p36 = scmp.eq.s32.totalorder %s17, 0
      %p37 = por %p35, %p36
      %p38 = scmp.ne.s32.totalorder %s27, %s30
      %p39 = scmp.eq.s32.totalorder %s22, 1
      %p40 = por %p38, %p39
      %p41 = scmp.ne.s32.totalorder %s30, %s31
      %p42 = scmp.eq.s32.totalorder %s22, 0
      %p43 = por %p41, %p42
      %p44 = scmp.ne.s32.totalorder %s30, %s31
      %p45 = scmp.eq.s32.totalorder %s23, 1
      %p46 = por %p44, %p45
      %p48 = scmp.ne.s32.totalorder %s31, %s47
      %p49 = scmp.eq.s32.totalorder %s23, 0
      %p50 = por %p48, %p49
      %s52 = sadd.s32 %s51, 1
      %p55 = scmp.eq.s32.totalorder %s17, 1
      %p56 = scmp.ne.s32.totalorder %s51, %s53
      %p57 = scmp.eq.s32.totalorder %s17, 0
      %p58 = por %p56, %p57
      %p59 = scmp.ne.s32.totalorder %s51, %s53
      %p60 = scmp.eq.s32.totalorder %s22, 1
      %p61 = por %p59, %p60
      %p62 = scmp.ne.s32.totalorder %s53, %s54
      %p63 = scmp.eq.s32.totalorder %s22, 0
      %p64 = por %p62, %p63
      %p65 = scmp.ne.s32.totalorder %s53, %s54
      %p66 = scmp.eq.s32.totalorder %s23, 1
      %p67 = por %p65, %p66
      %p69 = scmp.ne.s32.totalorder %s54, %s68
      %p70 = scmp.eq.s32.totalorder %s23, 0
      %p71 = por %p69, %p70
      %s72 = ssub.s32 %s17, %s24
      %p73 = scmp.eq.s32.totalorder %s72, 0
      %s75 = sadd.s32 %s74, 1
      %s76 = scalar_select %p73, %s74, %s75
      %p79 = pneg %p73
      %p80 = scmp.eq.s32.totalorder %s17, 1
      %p81 = por %p79, %p80
      %p82 = scmp.ne.s32.totalorder %s74, %s77
      %p83 = scmp.eq.s32.totalorder %s17, 0
      %p84 = por %p82, %p83
      %p85 = scmp.ne.s32.totalorder %s74, %s77
      %p86 = scmp.eq.s32.totalorder %s22, 1
      %p87 = por %p85, %p86
      %p88 = scmp.ne.s32.totalorder %s77, %s78
      %p89 = scmp.eq.s32.totalorder %s22, 0
      %p90 = por %p88, %p89
      %p91 = scmp.ne.s32.totalorder %s77, %s78
      %p92 = scmp.eq.s32.totalorder %s23, 1
      %p93 = por %p91, %p92
      %p95 = scmp.ne.s32.totalorder %s78, %s94
      %p96 = scmp.eq.s32.totalorder %s23, 0
      %p97 = por %p95, %p96
      %s99 = sadd.s32 %s98, 1
      %p102 = scmp.eq.s32.totalorder %s17, 1
      %p103 = scmp.ne.s32.totalorder %s98, %s100
      %p104 = scmp.eq.s32.totalorder %s17, 0
      %p105 = por %p103, %p104
      %p106 = scmp.ne.s32.totalorder %s98, %s100
      %p107 = scmp.eq.s32.totalorder %s22, 1
      %p108 = por %p106, %p107
      %p109 = scmp.ne.s32.totalorder %s100, %s101
      %p110 = scmp.eq.s32.totalorder %s22, 0
      %p111 = por %p109, %p110
      %p112 = scmp.ne.s32.totalorder %s100, %s101
      %p113 = scmp.eq.s32.totalorder %s23, 1
      %p114 = por %p112, %p113
      %p116 = scmp.ne.s32.totalorder %s101, %s115
      %p117 = scmp.eq.s32.totalorder %s23, 0
      %p118 = por %p116, %p117
      %s120 = sadd.s32 %s119, 1
      %p123 = scmp.eq.s32.totalorder %s17, 1
      %p124 = scmp.ne.s32.totalorder %s119, %s121
      %p125 = scmp.eq.s32.totalorder %s17, 0
      %p126 = por %p124, %p125
      %p127 = scmp.ne.s32.totalorder %s119, %s121
      %p128 = scmp.eq.s32.totalorder %s22, 1
      %p129 = por %p127, %p128
      %p130 = scmp.ne.s32.totalorder %s121, %s122
      %p131 = scmp.eq.s32.totalorder %s22, 0
      %p132 = por %p130, %p131
      %p133 = scmp.ne.s32.totalorder %s121, %s122
      %p134 = scmp.eq.s32.totalorder %s23, 1
      %p135 = por %p133, %p134
      %p137 = scmp.ne.s32.totalorder %s122, %s136
      %p138 = scmp.eq.s32.totalorder %s23, 0
      %p139 = por %p137, %p138
      %s141 = sadd.s32 %s140, 1
      %p144 = scmp.eq.s32.totalorder %s17, 1
      %p145 = scmp.ne.s32.totalorder %s140, %s142
      %p146 = scmp.eq.s32.totalorder %s17, 0
      %p147 = por %p145, %p146
      %p148 = scmp.ne.s32.totalorder %s140, %s142
      %p149 = scmp.eq.s32.totalorder %s22, 1
      %p150 = por %p148, %p149
      %p151 = scmp.ne.s32.totalorder %s142, %s143
      %p152 = scmp.eq.s32.totalorder %s22, 0
      %p153 = por %p151, %p152
      %p154 = scmp.ne.s32.totalorder %s142, %s143
      %p155 = scmp.eq.s32.totalorder %s23, 1
      %p156 = por %p154, %p155
      %p158 = scmp.ne.s32.totalorder %s143, %s157
      %p159 = scmp.eq.s32.totalorder %s23, 0
      %p160 = por %p158, %p159
      %s162 = sadd.s32 %s161, 1
      %p165 = scmp.eq.s32.totalorder %s17, 1
      %p166 = scmp.ne.s32.totalorder %s161, %s163
      %p167 = scmp.eq.s32.totalorder %s17, 0
      %p168 = por %p166, %p167
      %p169 = scmp.ne.s32.totalorder %s161, %s163
      %p170 = scmp.eq.s32.totalorder %s22, 1
      %p171 = por %p169, %p170
      %p172 = scmp.ne.s32.totalorder %s163, %s164
      %p173 = scmp.eq.s32.totalorder %s22, 0
      %p174 = por %p172, %p173
      %p175 = scmp.ne.s32.totalorder %s163, %s164
      %p176 = scmp.eq.s32.totalorder %s23, 1
      %p177 = por %p175, %p176
      %p179 = scmp.ne.s32.totalorder %s164, %s178
      %p180 = scmp.eq.s32.totalorder %s23, 0
      %p181 = por %p179, %p180
      %p182 = scmp.le.s32.totalorder 1, %s17
      %p183 = scmp.lt.s32.totalorder %s17, 3
      %p184 = pnand %p182, %p183
      %p185 = pneg %p184
      // Predicated region
      $region9: #{euler_reservoir_cell.1} parent=5 // pred_check
        _
      $region10: #{euler_reservoir_cell.1} parent=5 // pred_check_branch
        %187 = sbr.rel (%p184) target = $region12
      $region11: #{euler_reservoir_cell.1} parent=5 // pred_region
        %s188 = ssub.s32 %s17, 1
        // Predicated region
        $region13: #{euler_reservoir_cell.1} parent=11 // pred_check
          %p189 = pneg %p64
        $region14: #{euler_reservoir_cell.1} parent=11 // pred_check_branch
          %191 = sbr.rel (%p189) target = $region16
        $region15: #{euler_reservoir_cell.1} parent=11 // pred_region
          %s193 = ssub.s32 128, 128
          %194 = vsyncadd [#allocation5], %s193
          %s196 = sshll.u32 [#allocation4], 4
          %s197 = int_to_ptr.vmem [resolvable:$true] %s196
          %199 = dma.hbm_to_vmem [thread:$0]  %s1, 128, %s197, [#allocation5]
        $region16: #{euler_reservoir_cell.1} parent=11 // pred_fallthru
          _
        // Predicated region
        $region17: #{euler_reservoir_cell.1} parent=11 // pred_check
          %p200 = pneg %p111
        $region18: #{euler_reservoir_cell.1} parent=11 // pred_check_branch
          %202 = sbr.rel (%p200) target = $region20
        $region19: #{euler_reservoir_cell.1} parent=11 // pred_region
          _
        $region20: #{euler_reservoir_cell.1} parent=11 // pred_fallthru
          _
        // Predicated region
        $region21: #{euler_reservoir_cell.1} parent=11 // pred_check
          %p203 = pneg %p132
        $region22: #{euler_reservoir_cell.1} parent=11 // pred_check_branch
          %205 = sbr.rel (%p203) target = $region24
        $region23: #{euler_reservoir_cell.1} parent=11 // pred_region
          %s207 = ssub.s32 1024, 1024
          %208 = vsyncadd [#allocation5], %s207
          %s209 = sshll.u32 [#allocation7], 4
          %s210 = int_to_ptr.vmem [resolvable:$true] %s209
          %215 = dma.hbm_to_vmem [thread:$0]  %s4, 1024, %s210, [#allocation5], 64, 64, 4
        $region24: #{euler_reservoir_cell.1} parent=11 // pred_fallthru
          _
        // Predicated region
        $region25: #{euler_reservoir_cell.1} parent=11 // pred_check
          %p216 = pneg %p153
        $region26: #{euler_reservoir_cell.1} parent=11 // pred_check_branch
          %218 = sbr.rel (%p216) target = $region28
        $region27: #{euler_reservoir_cell.1} parent=11 // pred_region
          %s220 = ssub.s32 1024, 1024
          %221 = vsyncadd [#allocation9], %s220
          %s222 = sshll.u32 [#allocation8], 4
          %s223 = int_to_ptr.vmem [resolvable:$true] %s222
          %228 = dma.hbm_to_vmem [thread:$0]  %s5, 1024, %s223, [#allocation9], 64, 64, 4
        $region28: #{euler_reservoir_cell.1} parent=11 // pred_fallthru
          _
      $region12: #{euler_reservoir_cell.1} parent=5 // pred_fallthru
        _
      %p229 = scmp.lt.s32.totalorder %s17, 2
      // Predicated region
      $region29: #{euler_reservoir_cell.1} parent=5 // pred_check
        %p230 = pneg %p229
      $region30: #{euler_reservoir_cell.1} parent=5 // pred_check_branch
        %232 = sbr.rel (%p230) target = $region32
      $region31: #{euler_reservoir_cell.1} parent=5 // pred_region
        // Predicated region
        $region33: #{euler_reservoir_cell.1} parent=31 // pred_check
          %p233 = pneg %p37
        $region34: #{euler_reservoir_cell.1} parent=31 // pred_check_branch
          %235 = sbr.rel (%p233) target = $region36
        $region35: #{euler_reservoir_cell.1} parent=31 // pred_region
          %s236 = sand.u32 %s17, 1
          %s237 = scalar_lea.sflag [#allocation3], %s236
          %s238 = sand.u32 %s27, 1
          %s239 = smul.addr %s238, 56
          %s240 = scalar_lea.vmem [#allocation2], %s239
          %s241 = smul.u32 7, %s17
          %s243 = ssub.s32 896, 896
          %244 = vsyncadd %s237, %s243
          %s245 = smul.addr %s241, 128
          %s246 = scalar_lea.hbm %s0, %s245
          %s248 = sshll.u32 %s240, 4
          %s249 = int_to_ptr.vmem [resolvable:$true] %s248
          %251 = dma.hbm_to_vmem [thread:$0]  %s246, 896, %s249, %s237
        $region36: #{euler_reservoir_cell.1} parent=31 // pred_fallthru
          _
        // Predicated region
        $region37: #{euler_reservoir_cell.1} parent=31 // pred_check
          %p252 = pneg %p84
        $region38: #{euler_reservoir_cell.1} parent=31 // pred_check_branch
          %254 = sbr.rel (%p252) target = $region40
        $region39: #{euler_reservoir_cell.1} parent=31 // pred_region
          %s255 = sand.u32 %s17, 1
          %s256 = scalar_lea.sflag [#allocation3], %s255
          %s257 = sand.u32 %s74, 1
          %s258 = smul.addr %s257, 448
          %s259 = scalar_lea.vmem [#allocation6], %s258
          %s260 = smul.u32 112, %s17
          %s262 = ssub.s32 7168, 7168
          %263 = vsyncadd %s256, %s262
          %s264 = smul.addr %s260, 64
          %s265 = scalar_lea.hbm %s2, %s264
          %s266 = sshll.u32 %s259, 4
          %s267 = int_to_ptr.vmem [resolvable:$true] %s266
          %272 = dma.hbm_to_vmem [thread:$0]  %s265, 7168, %s267, %s256, 64, 64, 4
        $region40: #{euler_reservoir_cell.1} parent=31 // pred_fallthru
          _
      $region32: #{euler_reservoir_cell.1} parent=5 // pred_fallthru
        _
      %p273 = scmp.le.s32.totalorder 1, %s17
      %p274 = scmp.lt.s32.totalorder %s17, 3
      %p275 = pnand %p273, %p274
      %p276 = pneg %p275
      // Predicated region
      $region41: #{euler_reservoir_cell.1} parent=5 // pred_check
        _
      $region42: #{euler_reservoir_cell.1} parent=5 // pred_check_branch
        %278 = sbr.rel (%p275) target = $region44
      $region43: #{euler_reservoir_cell.1} parent=5 // pred_region
        %s279 = ssub.s32 %s17, 1
        %s280 = sand.u32 %s22, 1
        %s281 = scalar_lea.sflag [#allocation3], %s280
        %s282 = sand.u32 %s30, 1
        %s283 = smul.addr %s282, 56
        %s284 = scalar_lea.vmem [#allocation2], %s283
        // Predicated region
        $region45: #{euler_reservoir_cell.1} parent=43 // pred_check
          %p285 = pneg %p43
        $region46: #{euler_reservoir_cell.1} parent=43 // pred_check_branch
          %287 = sbr.rel (%p285) target = $region48
        $region47: #{euler_reservoir_cell.1} parent=43 // pred_region
          %288 = dma.done %s281, 896
        $region48: #{euler_reservoir_cell.1} parent=43 // pred_fallthru
          _
        // Predicated region
        $region49: #{euler_reservoir_cell.1} parent=43 // pred_check
          %p289 = pneg %p64
        $region50: #{euler_reservoir_cell.1} parent=43 // pred_check_branch
          %291 = sbr.rel (%p289) target = $region52
        $region51: #{euler_reservoir_cell.1} parent=43 // pred_region
          %292 = dma.done [#allocation5], 128
        $region52: #{euler_reservoir_cell.1} parent=43 // pred_fallthru
          _
        %s293 = sand.u32 %s22, 1
        %s294 = scalar_lea.sflag [#allocation3], %s293
        %s295 = sand.u32 %s77, 1
        %s296 = smul.addr %s295, 448
        %s297 = scalar_lea.vmem [#allocation6], %s296
        // Predicated region
        $region53: #{euler_reservoir_cell.1} parent=43 // pred_check
          %p298 = pneg %p90
        $region54: #{euler_reservoir_cell.1} parent=43 // pred_check_branch
          %300 = sbr.rel (%p298) target = $region56
        $region55: #{euler_reservoir_cell.1} parent=43 // pred_region
          %301 = dma.done %s294, 7168
        $region56: #{euler_reservoir_cell.1} parent=43 // pred_fallthru
          _
        // Predicated region
        $region57: #{euler_reservoir_cell.1} parent=43 // pred_check
          %p302 = pneg %p132
        $region58: #{euler_reservoir_cell.1} parent=43 // pred_check_branch
          %304 = sbr.rel (%p302) target = $region60
        $region59: #{euler_reservoir_cell.1} parent=43 // pred_region
          %305 = dma.done [#allocation5], 1024
        $region60: #{euler_reservoir_cell.1} parent=43 // pred_fallthru
          _
        // Predicated region
        $region61: #{euler_reservoir_cell.1} parent=43 // pred_check
          %p306 = pneg %p153
        $region62: #{euler_reservoir_cell.1} parent=43 // pred_check_branch
          %308 = sbr.rel (%p306) target = $region64
        $region63: #{euler_reservoir_cell.1} parent=43 // pred_region
          %309 = dma.done [#allocation9], 1024
        $region64: #{euler_reservoir_cell.1} parent=43 // pred_fallthru
          _
        %s310 = sand.u32 %s22, 1
        %s311 = scalar_lea.sflag [#allocation3], %s310
        %s312 = sand.u32 %s30, 1
        %s313 = smul.addr %s312, 56
        %s314 = scalar_lea.vmem [#allocation2], %s313
        %p315 = pneg %p43
        %p316 = pneg %p40
        %p317 = pneg %p64
        %p318 = pneg %p61
        %s319 = sand.u32 %s22, 1
        %s320 = scalar_lea.sflag [#allocation3], %s319
        %s321 = sand.u32 %s77, 1
        %s322 = smul.addr %s321, 448
        %s323 = scalar_lea.vmem [#allocation6], %s322
        %p324 = pneg %p90
        %p325 = pneg %p87
        %p326 = pneg %p111
        %p327 = pneg %p108
        %p328 = pneg %p132
        %p329 = pneg %p129
        %p330 = pneg %p153
        %p331 = pneg %p150
        %p332 = pneg %p174
        %p333 = pneg %p171
        %s334 = smul.u32 7, %s22
        %s335 = smul.u32 112, %s22
        %p337 = scmp.eq.s32.totalorder %s22, 0
        // Predicated region
        $region65: #{euler_reservoir_cell.1} parent=43 // pred_check
          %p338 = pneg %p337
        $region66: #{euler_reservoir_cell.1} parent=43 // pred_check_branch
          %340 = sbr.rel (%p338) target = $region68
        $region67: #{euler_reservoir_cell.1} parent=43 // pred_region
          %341 = vst [vmem:[%s6] sm:$0xff] 0.0
        $region68: #{euler_reservoir_cell.1} parent=43 // pred_fallthru
          _
        %v342 = vld [vmem:[%s6] sm:$0xff]
        %v343 = vld [vmem:[%s284] sm:$0xff]
        %v344 = vld [vmem:[%s284 + $0x8] sm:$0xff]
        %v345 = vld [vmem:[%s284 + $0x10] sm:$0xff]
        %v346 = vld [vmem:[%s284 + $0x18] sm:$0xff]
        %v347 = vld [vmem:[%s284 + $0x20] sm:$0xff]
        %v348 = vld [vmem:[%s284 + $0x28] sm:$0xff]
        %v349 = vld [vmem:[%s284 + $0x30] sm:$0xff]
        %v350 = vpack.c.bf16 %v343, %v343
        %v351 = vpack.c.bf16 %v344, %v344
        %v352 = vpack.c.bf16 %v345, %v345
        %v353 = vpack.c.bf16 %v346, %v346
        %v354 = vpack.c.bf16 %v347, %v347
        %v355 = vpack.c.bf16 %v348, %v348
        %v356 = vpack.c.bf16 %v349, %v349
        %v357 = vld [vmem:[%s297] sm:$0xf]
        %v358 = vld [vmem:[%s297 + $0x4] sm:$0xf]
        %v359 = vld [vmem:[%s297 + $0x8] sm:$0xf]
        %v360 = vld [vmem:[%s297 + $0xc] sm:$0xf]
        %v361 = vld [vmem:[%s297 + $0x10] sm:$0xf]
        %v362 = vld [vmem:[%s297 + $0x14] sm:$0xf]
        %v363 = vld [vmem:[%s297 + $0x18] sm:$0xf]
        %v364 = vld [vmem:[%s297 + $0x1c] sm:$0xf]
        %v365 = vld [vmem:[%s297 + $0x20] sm:$0xf]
        %v366 = vld [vmem:[%s297 + $0x24] sm:$0xf]
        %v367 = vld [vmem:[%s297 + $0x28] sm:$0xf]
        %v368 = vld [vmem:[%s297 + $0x2c] sm:$0xf]
        %v369 = vld [vmem:[%s297 + $0x30] sm:$0xf]
        %v370 = vld [vmem:[%s297 + $0x34] sm:$0xf]
        %v371 = vld [vmem:[%s297 + $0x38] sm:$0xf]
        %v372 = vld [vmem:[%s297 + $0x3c] sm:$0xf]
        %v373 = vld [vmem:[%s297 + $0x40] sm:$0xf]
        %v374 = vld [vmem:[%s297 + $0x44] sm:$0xf]
        %v375 = vld [vmem:[%s297 + $0x48] sm:$0xf]
        %v376 = vld [vmem:[%s297 + $0x4c] sm:$0xf]
        %v377 = vld [vmem:[%s297 + $0x50] sm:$0xf]
        %v378 = vld [vmem:[%s297 + $0x54] sm:$0xf]
        %v379 = vld [vmem:[%s297 + $0x58] sm:$0xf]
        %v380 = vld [vmem:[%s297 + $0x5c] sm:$0xf]
        %v381 = vld [vmem:[%s297 + $0x60] sm:$0xf]
        %v382 = vld [vmem:[%s297 + $0x64] sm:$0xf]
        %v383 = vld [vmem:[%s297 + $0x68] sm:$0xf]
        %v384 = vld [vmem:[%s297 + $0x6c] sm:$0xf]
        %v385 = vld [vmem:[%s297 + $0x70] sm:$0xf]
        %v386 = vld [vmem:[%s297 + $0x74] sm:$0xf]
        %v387 = vld [vmem:[%s297 + $0x78] sm:$0xf]
        %v388 = vld [vmem:[%s297 + $0x7c] sm:$0xf]
        %v389 = vld [vmem:[%s297 + $0x80] sm:$0xf]
        %v390 = vld [vmem:[%s297 + $0x84] sm:$0xf]
        %v391 = vld [vmem:[%s297 + $0x88] sm:$0xf]
        %v392 = vld [vmem:[%s297 + $0x8c] sm:$0xf]
        %v393 = vld [vmem:[%s297 + $0x90] sm:$0xf]
        %v394 = vld [vmem:[%s297 + $0x94] sm:$0xf]
        %v395 = vld [vmem:[%s297 + $0x98] sm:$0xf]
        %v396 = vld [vmem:[%s297 + $0x9c] sm:$0xf]
        %v397 = vld [vmem:[%s297 + $0xa0] sm:$0xf]
        %v398 = vld [vmem:[%s297 + $0xa4] sm:$0xf]
        %v399 = vld [vmem:[%s297 + $0xa8] sm:$0xf]
        %v400 = vld [vmem:[%s297 + $0xac] sm:$0xf]
        %v401 = vld [vmem:[%s297 + $0xb0] sm:$0xf]
        %v402 = vld [vmem:[%s297 + $0xb4] sm:$0xf]
        %v403 = vld [vmem:[%s297 + $0xb8] sm:$0xf]
        %v404 = vld [vmem:[%s297 + $0xbc] sm:$0xf]
        %v405 = vld [vmem:[%s297 + $0xc0] sm:$0xf]
        %v406 = vld [vmem:[%s297 + $0xc4] sm:$0xf]
        %v407 = vld [vmem:[%s297 + $0xc8] sm:$0xf]
        %v408 = vld [vmem:[%s297 + $0xcc] sm:$0xf]
        %v409 = vld [vmem:[%s297 + $0xd0] sm:$0xf]
        %v410 = vld [vmem:[%s297 + $0xd4] sm:$0xf]
        %v411 = vld [vmem:[%s297 + $0xd8] sm:$0xf]
        %v412 = vld [vmem:[%s297 + $0xdc] sm:$0xf]
        %v413 = vld [vmem:[%s297 + $0xe0] sm:$0xf]
        %v414 = vld [vmem:[%s297 + $0xe4] sm:$0xf]
        %v415 = vld [vmem:[%s297 + $0xe8] sm:$0xf]
        %v416 = vld [vmem:[%s297 + $0xec] sm:$0xf]
        %v417 = vld [vmem:[%s297 + $0xf0] sm:$0xf]
        %v418 = vld [vmem:[%s297 + $0xf4] sm:$0xf]
        %v419 = vld [vmem:[%s297 + $0xf8] sm:$0xf]
        %v420 = vld [vmem:[%s297 + $0xfc] sm:$0xf]
        %v421 = vld [vmem:[%s297 + $0x100] sm:$0xf]
        %v422 = vld [vmem:[%s297 + $0x104] sm:$0xf]
        %v423 = vld [vmem:[%s297 + $0x108] sm:$0xf]
        %v424 = vld [vmem:[%s297 + $0x10c] sm:$0xf]
        %v425 = vld [vmem:[%s297 + $0x110] sm:$0xf]
        %v426 = vld [vmem:[%s297 + $0x114] sm:$0xf]
        %v427 = vld [vmem:[%s297 + $0x118] sm:$0xf]
        %v428 = vld [vmem:[%s297 + $0x11c] sm:$0xf]
        %v429 = vld [vmem:[%s297 + $0x120] sm:$0xf]
        %v430 = vld [vmem:[%s297 + $0x124] sm:$0xf]
        %v431 = vld [vmem:[%s297 + $0x128] sm:$0xf]
        %v432 = vld [vmem:[%s297 + $0x12c] sm:$0xf]
        %v433 = vld [vmem:[%s297 + $0x130] sm:$0xf]
        %v434 = vld [vmem:[%s297 + $0x134] sm:$0xf]
        %v435 = vld [vmem:[%s297 + $0x138] sm:$0xf]
        %v436 = vld [vmem:[%s297 + $0x13c] sm:$0xf]
        %v437 = vld [vmem:[%s297 + $0x140] sm:$0xf]
        %v438 = vld [vmem:[%s297 + $0x144] sm:$0xf]
        %v439 = vld [vmem:[%s297 + $0x148] sm:$0xf]
        %v440 = vld [vmem:[%s297 + $0x14c] sm:$0xf]
        %v441 = vld [vmem:[%s297 + $0x150] sm:$0xf]
        %v442 = vld [vmem:[%s297 + $0x154] sm:$0xf]
        %v443 = vld [vmem:[%s297 + $0x158] sm:$0xf]
        %v444 = vld [vmem:[%s297 + $0x15c] sm:$0xf]
        %v445 = vld [vmem:[%s297 + $0x160] sm:$0xf]
        %v446 = vld [vmem:[%s297 + $0x164] sm:$0xf]
        %v447 = vld [vmem:[%s297 + $0x168] sm:$0xf]
        %v448 = vld [vmem:[%s297 + $0x16c] sm:$0xf]
        %v449 = vld [vmem:[%s297 + $0x170] sm:$0xf]
        %v450 = vld [vmem:[%s297 + $0x174] sm:$0xf]
        %v451 = vld [vmem:[%s297 + $0x178] sm:$0xf]
        %v452 = vld [vmem:[%s297 + $0x17c] sm:$0xf]
        %v453 = vld [vmem:[%s297 + $0x180] sm:$0xf]
        %v454 = vld [vmem:[%s297 + $0x184] sm:$0xf]
        %v455 = vld [vmem:[%s297 + $0x188] sm:$0xf]
        %v456 = vld [vmem:[%s297 + $0x18c] sm:$0xf]
        %v457 = vld [vmem:[%s297 + $0x190] sm:$0xf]
        %v458 = vld [vmem:[%s297 + $0x194] sm:$0xf]
        %v459 = vld [vmem:[%s297 + $0x198] sm:$0xf]
        %v460 = vld [vmem:[%s297 + $0x19c] sm:$0xf]
        %v461 = vld [vmem:[%s297 + $0x1a0] sm:$0xf]
        %v462 = vld [vmem:[%s297 + $0x1a4] sm:$0xf]
        %v463 = vld [vmem:[%s297 + $0x1a8] sm:$0xf]
        %v464 = vld [vmem:[%s297 + $0x1ac] sm:$0xf]
        %v465 = vld [vmem:[%s297 + $0x1b0] sm:$0xf]
        %v466 = vld [vmem:[%s297 + $0x1b4] sm:$0xf]
        %v467 = vld [vmem:[%s297 + $0x1b8] sm:$0xf]
        %v468 = vld [vmem:[%s297 + $0x1bc] sm:$0xf]
        %v581 = vunpack.c.l.b16 %v357
        %v582 = vunpack.c.l.b16 %v358
        %v583 = vunpack.c.l.b16 %v359
        %v584 = vunpack.c.l.b16 %v360
        %v585 = vunpack.c.l.b16 %v361
        %v586 = vunpack.c.l.b16 %v362
        %v587 = vunpack.c.l.b16 %v363
        %v588 = vunpack.c.l.b16 %v364
        %v589 = vunpack.c.l.b16 %v365
        %v590 = vunpack.c.l.b16 %v366
        %v591 = vunpack.c.l.b16 %v367
        %v592 = vunpack.c.l.b16 %v368
        %v593 = vunpack.c.l.b16 %v369
        %v594 = vunpack.c.l.b16 %v370
        %v595 = vunpack.c.l.b16 %v371
        %v596 = vunpack.c.l.b16 %v372
        %v597 = vunpack.c.l.b16 %v373
        %v598 = vunpack.c.l.b16 %v374
        %v599 = vunpack.c.l.b16 %v375
        %v600 = vunpack.c.l.b16 %v376
        %v601 = vunpack.c.l.b16 %v377
        %v602 = vunpack.c.l.b16 %v378
        %v603 = vunpack.c.l.b16 %v379
        %v604 = vunpack.c.l.b16 %v380
        %v605 = vunpack.c.l.b16 %v381
        %v606 = vunpack.c.l.b16 %v382
        %v607 = vunpack.c.l.b16 %v383
        %v608 = vunpack.c.l.b16 %v384
        %v609 = vunpack.c.l.b16 %v385
        %v610 = vunpack.c.l.b16 %v386
        %v611 = vunpack.c.l.b16 %v387
        %v612 = vunpack.c.l.b16 %v388
        %v613 = vunpack.c.l.b16 %v389
        %v614 = vunpack.c.l.b16 %v390
        %v615 = vunpack.c.l.b16 %v391
        %v616 = vunpack.c.l.b16 %v392
        %v617 = vunpack.c.l.b16 %v393
        %v618 = vunpack.c.l.b16 %v394
        %v619 = vunpack.c.l.b16 %v395
        %v620 = vunpack.c.l.b16 %v396
        %v621 = vunpack.c.l.b16 %v397
        %v622 = vunpack.c.l.b16 %v398
        %v623 = vunpack.c.l.b16 %v399
        %v624 = vunpack.c.l.b16 %v400
        %v625 = vunpack.c.l.b16 %v401
        %v626 = vunpack.c.l.b16 %v402
        %v627 = vunpack.c.l.b16 %v403
        %v628 = vunpack.c.l.b16 %v404
        %v629 = vunpack.c.l.b16 %v405
        %v630 = vunpack.c.l.b16 %v406
        %v631 = vunpack.c.l.b16 %v407
        %v632 = vunpack.c.l.b16 %v408
        %v633 = vunpack.c.l.b16 %v409
        %v634 = vunpack.c.l.b16 %v410
        %v635 = vunpack.c.l.b16 %v411
        %v636 = vunpack.c.l.b16 %v412
        %v637 = vunpack.c.l.b16 %v413
        %v638 = vunpack.c.l.b16 %v414
        %v639 = vunpack.c.l.b16 %v415
        %v640 = vunpack.c.l.b16 %v416
        %v641 = vunpack.c.l.b16 %v417
        %v642 = vunpack.c.l.b16 %v418
        %v643 = vunpack.c.l.b16 %v419
        %v644 = vunpack.c.l.b16 %v420
        %v645 = vunpack.c.l.b16 %v421
        %v646 = vunpack.c.l.b16 %v422
        %v647 = vunpack.c.l.b16 %v423
        %v648 = vunpack.c.l.b16 %v424
        %v649 = vunpack.c.l.b16 %v425
        %v650 = vunpack.c.l.b16 %v426
        %v651 = vunpack.c.l.b16 %v427
        %v652 = vunpack.c.l.b16 %v428
        %v653 = vunpack.c.l.b16 %v429
        %v654 = vunpack.c.l.b16 %v430
        %v655 = vunpack.c.l.b16 %v431
        %v656 = vunpack.c.l.b16 %v432
        %v657 = vunpack.c.l.b16 %v433
        %v658 = vunpack.c.l.b16 %v434
        %v659 = vunpack.c.l.b16 %v435
        %v660 = vunpack.c.l.b16 %v436
        %v661 = vunpack.c.l.b16 %v437
        %v662 = vunpack.c.l.b16 %v438
        %v663 = vunpack.c.l.b16 %v439
        %v664 = vunpack.c.l.b16 %v440
        %v665 = vunpack.c.l.b16 %v441
        %v666 = vunpack.c.l.b16 %v442
        %v667 = vunpack.c.l.b16 %v443
        %v668 = vunpack.c.l.b16 %v444
        %v669 = vunpack.c.l.b16 %v445
        %v670 = vunpack.c.l.b16 %v446
        %v671 = vunpack.c.l.b16 %v447
        %v672 = vunpack.c.l.b16 %v448
        %v673 = vunpack.c.l.b16 %v449
        %v674 = vunpack.c.l.b16 %v450
        %v675 = vunpack.c.l.b16 %v451
        %v676 = vunpack.c.l.b16 %v452
        %v677 = vunpack.c.l.b16 %v453
        %v678 = vunpack.c.l.b16 %v454
        %v679 = vunpack.c.l.b16 %v455
        %v680 = vunpack.c.l.b16 %v456
        %v681 = vunpack.c.l.b16 %v457
        %v682 = vunpack.c.l.b16 %v458
        %v683 = vunpack.c.l.b16 %v459
        %v684 = vunpack.c.l.b16 %v460
        %v685 = vunpack.c.l.b16 %v461
        %v686 = vunpack.c.l.b16 %v462
        %v687 = vunpack.c.l.b16 %v463
        %v688 = vunpack.c.l.b16 %v464
        %v689 = vunpack.c.l.b16 %v465
        %v690 = vunpack.c.l.b16 %v466
        %v691 = vunpack.c.l.b16 %v467
        %v692 = vunpack.c.l.b16 %v468
        %v693 = vpack.c.b16 %v582, %v581
        %v694 = vpack.c.b16 %v584, %v583
        %v695 = vpack.c.b16 %v586, %v585
        %v696 = vpack.c.b16 %v588, %v587
        %v697 = vpack.c.b16 %v590, %v589
        %v698 = vpack.c.b16 %v592, %v591
        %v699 = vpack.c.b16 %v594, %v593
        %v700 = vpack.c.b16 %v596, %v595
        %v701 = vpack.c.b16 %v598, %v597
        %v702 = vpack.c.b16 %v600, %v599
        %v703 = vpack.c.b16 %v602, %v601
        %v704 = vpack.c.b16 %v604, %v603
        %v705 = vpack.c.b16 %v606, %v605
        %v706 = vpack.c.b16 %v608, %v607
        %v707 = vpack.c.b16 %v610, %v609
        %v708 = vpack.c.b16 %v612, %v611
        %v709 = vpack.c.b16 %v614, %v613
        %v710 = vpack.c.b16 %v616, %v615
        %v711 = vpack.c.b16 %v618, %v617
        %v712 = vpack.c.b16 %v620, %v619
        %v713 = vpack.c.b16 %v622, %v621
        %v714 = vpack.c.b16 %v624, %v623
        %v715 = vpack.c.b16 %v626, %v625
        %v716 = vpack.c.b16 %v628, %v627
        %v717 = vpack.c.b16 %v630, %v629
        %v718 = vpack.c.b16 %v632, %v631
        %v719 = vpack.c.b16 %v634, %v633
        %v720 = vpack.c.b16 %v636, %v635
        %v721 = vpack.c.b16 %v638, %v637
        %v722 = vpack.c.b16 %v640, %v639
        %v723 = vpack.c.b16 %v642, %v641
        %v724 = vpack.c.b16 %v644, %v643
        %v725 = vpack.c.b16 %v646, %v645
        %v726 = vpack.c.b16 %v648, %v647
        %v727 = vpack.c.b16 %v650, %v649
        %v728 = vpack.c.b16 %v652, %v651
        %v729 = vpack.c.b16 %v654, %v653
        %v730 = vpack.c.b16 %v656, %v655
        %v731 = vpack.c.b16 %v658, %v657
        %v732 = vpack.c.b16 %v660, %v659
        %v733 = vpack.c.b16 %v662, %v661
        %v734 = vpack.c.b16 %v664, %v663
        %v735 = vpack.c.b16 %v666, %v665
        %v736 = vpack.c.b16 %v668, %v667
        %v737 = vpack.c.b16 %v670, %v669
        %v738 = vpack.c.b16 %v672, %v671
        %v739 = vpack.c.b16 %v674, %v673
        %v740 = vpack.c.b16 %v676, %v675
        %v741 = vpack.c.b16 %v678, %v677
        %v742 = vpack.c.b16 %v680, %v679
        %v743 = vpack.c.b16 %v682, %v681
        %v744 = vpack.c.b16 %v684, %v683
        %v745 = vpack.c.b16 %v686, %v685
        %v746 = vpack.c.b16 %v688, %v687
        %v747 = vpack.c.b16 %v690, %v689
        %v748 = vpack.c.b16 %v692, %v691
        %805 = vmatprep.subr.bf16.mxu0 0
        %806 = vmatpush1.bf16.msra.mxu0 %v700
        %807 = vmatprep.subr.bf16.mxu0 0
        %808 = vmatpush1.bf16.msra.mxu0 %v699
        %809 = vmatprep.subr.bf16.mxu0 0
        %810 = vmatpush1.bf16.msra.mxu0 %v698
        %811 = vmatprep.subr.bf16.mxu0 0
        %812 = vmatpush1.bf16.msra.mxu0 %v697
        %813 = vmatprep.subr.bf16.mxu0 0
        %814 = vmatpush1.bf16.msra.mxu0 %v696
        %815 = vmatprep.subr.bf16.mxu0 0
        %816 = vmatpush1.bf16.msra.mxu0 %v695
        %817 = vmatprep.subr.bf16.mxu0 0
        %818 = vmatpush1.bf16.msra.mxu0 %v694
        %819 = vmatprep.subr.bf16.mxu0 0
        %820 = vmatpush1.bf16.msra.mxu0 %v693
        %821 = vmatprep.subr.bf16.mxu0 0
        %822 = vmatpush2.bf16.msra.mxu0 %v708
        %823 = vmatprep.subr.bf16.mxu0 0
        %824 = vmatpush2.bf16.msra.mxu0 %v707
        %825 = vmatprep.subr.bf16.mxu0 0
        %826 = vmatpush2.bf16.msra.mxu0 %v706
        %827 = vmatprep.subr.bf16.mxu0 0
        %828 = vmatpush2.bf16.msra.mxu0 %v705
        %829 = vmatprep.subr.bf16.mxu0 0
        %830 = vmatpush2.bf16.msra.mxu0 %v704
        %831 = vmatprep.subr.bf16.mxu0 0
        %832 = vmatpush2.bf16.msra.mxu0 %v703
        %833 = vmatprep.subr.bf16.mxu0 0
        %834 = vmatpush2.bf16.msra.mxu0 %v702
        %835 = vmatprep.subr.bf16.mxu0 0
        %836 = vmatpush2.bf16.msra.mxu0 %v701
        %837 = vmatprep.mubr.bf16.mxu0 %v351
        %838 = vmatmul.mubr.bf16.gmra.mxu0 %v350
        %v839 = vpop.f32.mrf.mxu0
        %v840 = vadd.f32 0.0, %v839
        %v841 = vpop.f32.mrf.mxu0
        %v842 = vpop.f32.mrf.mxu0
        %v843 = vpop.f32.mrf.mxu0
        %844 = vdwg.mxu0
        %845 = vmatprep.subr.bf16.mxu0 0
        %846 = vmatpush1.bf16.msra.mxu0 %v716
        %847 = vmatprep.subr.bf16.mxu0 0
        %848 = vmatpush1.bf16.msra.mxu0 %v715
        %849 = vmatprep.subr.bf16.mxu0 0
        %850 = vmatpush1.bf16.msra.mxu0 %v714
        %851 = vmatprep.subr.bf16.mxu0 0
        %852 = vmatpush1.bf16.msra.mxu0 %v713
        %853 = vmatprep.subr.bf16.mxu0 0
        %854 = vmatpush1.bf16.msra.mxu0 %v712
        %855 = vmatprep.subr.bf16.mxu0 0
        %856 = vmatpush1.bf16.msra.mxu0 %v711
        %857 = vmatprep.subr.bf16.mxu0 0
        %858 = vmatpush1.bf16.msra.mxu0 %v710
        %859 = vmatprep.subr.bf16.mxu0 0
        %860 = vmatpush1.bf16.msra.mxu0 %v709
        %861 = vmatprep.subr.bf16.mxu0 0
        %862 = vmatpush2.bf16.msra.mxu0 %v724
        %863 = vmatprep.subr.bf16.mxu0 0
        %864 = vmatpush2.bf16.msra.mxu0 %v723
        %865 = vmatprep.subr.bf16.mxu0 0
        %866 = vmatpush2.bf16.msra.mxu0 %v722
        %867 = vmatprep.subr.bf16.mxu0 0
        %868 = vmatpush2.bf16.msra.mxu0 %v721
        %869 = vmatprep.subr.bf16.mxu0 0
        %870 = vmatpush2.bf16.msra.mxu0 %v720
        %871 = vmatprep.subr.bf16.mxu0 0
        %872 = vmatpush2.bf16.msra.mxu0 %v719
        %873 = vmatprep.subr.bf16.mxu0 0
        %874 = vmatpush2.bf16.msra.mxu0 %v718
        %875 = vmatprep.subr.bf16.mxu0 0
        %876 = vmatpush2.bf16.msra.mxu0 %v717
        %877 = vmatprep.mubr.bf16.mxu0 %v353
        %878 = vmatmul.mubr.bf16.gmra.mxu0 %v352
        %v879 = vpop.f32.mrf.mxu0
        %v880 = vadd.f32 %v840, %v879
        %v881 = vpop.f32.mrf.mxu0
        %v882 = vpop.f32.mrf.mxu0
        %v883 = vpop.f32.mrf.mxu0
        %884 = vdwg.mxu0
        %885 = vmatprep.subr.bf16.mxu0 0
        %886 = vmatpush1.bf16.msra.mxu0 %v732
        %887 = vmatprep.subr.bf16.mxu0 0
        %888 = vmatpush1.bf16.msra.mxu0 %v731
        %889 = vmatprep.subr.bf16.mxu0 0
        %890 = vmatpush1.bf16.msra.mxu0 %v730
        %891 = vmatprep.subr.bf16.mxu0 0
        %892 = vmatpush1.bf16.msra.mxu0 %v729
        %893 = vmatprep.subr.bf16.mxu0 0
        %894 = vmatpush1.bf16.msra.mxu0 %v728
        %895 = vmatprep.subr.bf16.mxu0 0
        %896 = vmatpush1.bf16.msra.mxu0 %v727
        %897 = vmatprep.subr.bf16.mxu0 0
        %898 = vmatpush1.bf16.msra.mxu0 %v726
        %899 = vmatprep.subr.bf16.mxu0 0
        %900 = vmatpush1.bf16.msra.mxu0 %v725
        %901 = vmatprep.subr.bf16.mxu0 0
        %902 = vmatpush2.bf16.msra.mxu0 %v740
        %903 = vmatprep.subr.bf16.mxu0 0
        %904 = vmatpush2.bf16.msra.mxu0 %v739
        %905 = vmatprep.subr.bf16.mxu0 0
        %906 = vmatpush2.bf16.msra.mxu0 %v738
        %907 = vmatprep.subr.bf16.mxu0 0
        %908 = vmatpush2.bf16.msra.mxu0 %v737
        %909 = vmatprep.subr.bf16.mxu0 0
        %910 = vmatpush2.bf16.msra.mxu0 %v736
        %911 = vmatprep.subr.bf16.mxu0 0
        %912 = vmatpush2.bf16.msra.mxu0 %v735
        %913 = vmatprep.subr.bf16.mxu0 0
        %914 = vmatpush2.bf16.msra.mxu0 %v734
        %915 = vmatprep.subr.bf16.mxu0 0
        %916 = vmatpush2.bf16.msra.mxu0 %v733
        %917 = vmatprep.mubr.bf16.mxu0 %v355
        %918 = vmatmul.mubr.bf16.gmra.mxu0 %v354
        %v919 = vpop.f32.mrf.mxu0
        %v920 = vadd.f32 %v880, %v919
        %v921 = vpop.f32.mrf.mxu0
        %v922 = vpop.f32.mrf.mxu0
        %v923 = vpop.f32.mrf.mxu0
        %924 = vdwg.mxu0
        %925 = vmatprep.subr.bf16.mxu0 0
        %926 = vmatpush1.bf16.msra.mxu0 %v748
        %927 = vmatprep.subr.bf16.mxu0 0
        %928 = vmatpush1.bf16.msra.mxu0 %v747
        %929 = vmatprep.subr.bf16.mxu0 0
        %930 = vmatpush1.bf16.msra.mxu0 %v746
        %931 = vmatprep.subr.bf16.mxu0 0
        %932 = vmatpush1.bf16.msra.mxu0 %v745
        %933 = vmatprep.subr.bf16.mxu0 0
        %934 = vmatpush1.bf16.msra.mxu0 %v744
        %935 = vmatprep.subr.bf16.mxu0 0
        %936 = vmatpush1.bf16.msra.mxu0 %v743
        %937 = vmatprep.subr.bf16.mxu0 0
        %938 = vmatpush1.bf16.msra.mxu0 %v742
        %939 = vmatprep.subr.bf16.mxu0 0
        %940 = vmatpush1.bf16.msra.mxu0 %v741
        %941 = vmatprep.subr.bf16.mxu0 0
        %942 = vmatpush2.bf16.msra.mxu0 0
        %943 = vmatprep.subr.bf16.mxu0 0
        %944 = vmatpush2.bf16.msra.mxu0 0
        %945 = vmatprep.subr.bf16.mxu0 0
        %946 = vmatpush2.bf16.msra.mxu0 0
        %947 = vmatprep.subr.bf16.mxu0 0
        %948 = vmatpush2.bf16.msra.mxu0 0
        %949 = vmatprep.subr.bf16.mxu0 0
        %950 = vmatpush2.bf16.msra.mxu0 0
        %951 = vmatprep.subr.bf16.mxu0 0
        %952 = vmatpush2.bf16.msra.mxu0 0
        %953 = vmatprep.subr.bf16.mxu0 0
        %954 = vmatpush2.bf16.msra.mxu0 0
        %955 = vmatprep.subr.bf16.mxu0 0
        %956 = vmatpush2.bf16.msra.mxu0 0
        %957 = vmatprep.mubr.bf16.mxu0 0
        %958 = vmatmul.mubr.bf16.gmra.mxu0 %v356
        %v959 = vpop.f32.mrf.mxu0
        %v960 = vadd.f32 %v920, %v959
        %v961 = vpop.f32.mrf.mxu0
        %v962 = vpop.f32.mrf.mxu0
        %v963 = vpop.f32.mrf.mxu0
        %964 = vdwg.mxu0
        %v965 = vadd.f32 %v342, %v960
        %966 = vst [vmem:[%s6] sm:$0xff] %v965
        %p967 = scmp.eq.s32.totalorder %s22, 1
        // Predicated region
        $region69: #{euler_reservoir_cell.1} parent=43 // pred_check
          %p968 = pneg %p967
        $region70: #{euler_reservoir_cell.1} parent=43 // pred_check_branch
          %970 = sbr.rel (%p968) target = $region72
        $region71: #{euler_reservoir_cell.1} parent=43 // pred_region
          %v971 = vld [vmem:[%s6] sm:$0xff]
          %v972 = vld [vmem:[%s3] sm:$0x1]
          %v974 = vlaneseq
          %v975 = vshrl.u32 %v974, 7
          %v976 = vsub.s32 0, %v975
          %v977 = vrot.slane %v972, %v976
          %v979 = vadd.f32 %v971, %v977
          %v980 = vtanh.pop %v979
          %v981 = vld [vmem:[#allocation4] sm:$0xff]
          %v982 = vpack.c.bf16 %v980, %v980
          %v983 = vld [vmem:[#allocation7] sm:$0xf]
          %v984 = vld [vmem:[#allocation7 + $0x4] sm:$0xf]
          %v985 = vld [vmem:[#allocation7 + $0x8] sm:$0xf]
          %v986 = vld [vmem:[#allocation7 + $0xc] sm:$0xf]
          %v987 = vld [vmem:[#allocation7 + $0x10] sm:$0xf]
          %v988 = vld [vmem:[#allocation7 + $0x14] sm:$0xf]
          %v989 = vld [vmem:[#allocation7 + $0x18] sm:$0xf]
          %v990 = vld [vmem:[#allocation7 + $0x1c] sm:$0xf]
          %v991 = vld [vmem:[#allocation7 + $0x20] sm:$0xf]
          %v992 = vld [vmem:[#allocation7 + $0x24] sm:$0xf]
          %v993 = vld [vmem:[#allocation7 + $0x28] sm:$0xf]
          %v994 = vld [vmem:[#allocation7 + $0x2c] sm:$0xf]
          %v995 = vld [vmem:[#allocation7 + $0x30] sm:$0xf]
          %v996 = vld [vmem:[#allocation7 + $0x34] sm:$0xf]
          %v997 = vld [vmem:[#allocation7 + $0x38] sm:$0xf]
          %v998 = vld [vmem:[#allocation7 + $0x3c] sm:$0xf]
          %v999 = vpack.c.bf16 %v981, %v981
          %v1000 = vld [vmem:[#allocation8] sm:$0xf]
          %v1001 = vld [vmem:[#allocation8 + $0x4] sm:$0xf]
          %v1002 = vld [vmem:[#allocation8 + $0x8] sm:$0xf]
          %v1003 = vld [vmem:[#allocation8 + $0xc] sm:$0xf]
          %v1004 = vld [vmem:[#allocation8 + $0x10] sm:$0xf]
          %v1005 = vld [vmem:[#allocation8 + $0x14] sm:$0xf]
          %v1006 = vld [vmem:[#allocation8 + $0x18] sm:$0xf]
          %v1007 = vld [vmem:[#allocation8 + $0x1c] sm:$0xf]
          %v1008 = vld [vmem:[#allocation8 + $0x20] sm:$0xf]
          %v1009 = vld [vmem:[#allocation8 + $0x24] sm:$0xf]
          %v1010 = vld [vmem:[#allocation8 + $0x28] sm:$0xf]
          %v1011 = vld [vmem:[#allocation8 + $0x2c] sm:$0xf]
          %v1012 = vld [vmem:[#allocation8 + $0x30] sm:$0xf]
          %v1013 = vld [vmem:[#allocation8 + $0x34] sm:$0xf]
          %v1014 = vld [vmem:[#allocation8 + $0x38] sm:$0xf]
          %v1015 = vld [vmem:[#allocation8 + $0x3c] sm:$0xf]
          %v1032 = vunpack.c.l.b16 %v1000
          %v1033 = vunpack.c.l.b16 %v1001
          %v1034 = vunpack.c.l.b16 %v1002
          %v1035 = vunpack.c.l.b16 %v1003
          %v1036 = vunpack.c.l.b16 %v1004
          %v1037 = vunpack.c.l.b16 %v1005
          %v1038 = vunpack.c.l.b16 %v1006
          %v1039 = vunpack.c.l.b16 %v1007
          %v1040 = vunpack.c.l.b16 %v1008
          %v1041 = vunpack.c.l.b16 %v1009
          %v1042 = vunpack.c.l.b16 %v1010
          %v1043 = vunpack.c.l.b16 %v1011
          %v1044 = vunpack.c.l.b16 %v1012
          %v1045 = vunpack.c.l.b16 %v1013
          %v1046 = vunpack.c.l.b16 %v1014
          %v1047 = vunpack.c.l.b16 %v1015
          %v1048 = vpack.c.b16 %v1033, %v1032
          %v1049 = vpack.c.b16 %v1035, %v1034
          %v1050 = vpack.c.b16 %v1037, %v1036
          %v1051 = vpack.c.b16 %v1039, %v1038
          %v1052 = vpack.c.b16 %v1041, %v1040
          %v1053 = vpack.c.b16 %v1043, %v1042
          %v1054 = vpack.c.b16 %v1045, %v1044
          %v1055 = vpack.c.b16 %v1047, %v1046
          %1064 = vmatprep.subr.bf16.mxu0 0
          %1065 = vmatpush1.bf16.msra.mxu0 %v1055
          %1066 = vmatprep.subr.bf16.mxu0 0
          %1067 = vmatpush1.bf16.msra.mxu0 %v1054
          %1068 = vmatprep.subr.bf16.mxu0 0
          %1069 = vmatpush1.bf16.msra.mxu0 %v1053
          %1070 = vmatprep.subr.bf16.mxu0 0
          %1071 = vmatpush1.bf16.msra.mxu0 %v1052
          %1072 = vmatprep.subr.bf16.mxu0 0
          %1073 = vmatpush1.bf16.msra.mxu0 %v1051
          %1074 = vmatprep.subr.bf16.mxu0 0
          %1075 = vmatpush1.bf16.msra.mxu0 %v1050
          %1076 = vmatprep.subr.bf16.mxu0 0
          %1077 = vmatpush1.bf16.msra.mxu0 %v1049
          %1078 = vmatprep.subr.bf16.mxu0 0
          %1079 = vmatpush1.bf16.msra.mxu0 %v1048
          %1080 = vmatprep.subr.bf16.mxu0 0
          %1081 = vmatpush2.bf16.msra.mxu0 0
          %1082 = vmatprep.subr.bf16.mxu0 0
          %1083 = vmatpush2.bf16.msra.mxu0 0
          %1084 = vmatprep.subr.bf16.mxu0 0
          %1085 = vmatpush2.bf16.msra.mxu0 0
          %1086 = vmatprep.subr.bf16.mxu0 0
          %1087 = vmatpush2.bf16.msra.mxu0 0
          %1088 = vmatprep.subr.bf16.mxu0 0
          %1089 = vmatpush2.bf16.msra.mxu0 0
          %1090 = vmatprep.subr.bf16.mxu0 0
          %1091 = vmatpush2.bf16.msra.mxu0 0
          %1092 = vmatprep.subr.bf16.mxu0 0
          %1093 = vmatpush2.bf16.msra.mxu0 0
          %1094 = vmatprep.subr.bf16.mxu0 0
          %1095 = vmatpush2.bf16.msra.mxu0 0
          %1096 = vmatprep.mubr.bf16.mxu0 0
          %1097 = vmatmul.mubr.bf16.gmra.mxu0 %v999
          %v1098 = vpop.f32.mrf.mxu0
          %v1099 = vadd.f32 0.0, %v1098
          %v1100 = vpop.f32.mrf.mxu0
          %v1101 = vpop.f32.mrf.mxu0
          %v1102 = vpop.f32.mrf.mxu0
          %1103 = vdwg.mxu0
          %v1120 = vunpack.c.l.b16 %v983
          %v1121 = vunpack.c.l.b16 %v984
          %v1122 = vunpack.c.l.b16 %v985
          %v1123 = vunpack.c.l.b16 %v986
          %v1124 = vunpack.c.l.b16 %v987
          %v1125 = vunpack.c.l.b16 %v988
          %v1126 = vunpack.c.l.b16 %v989
          %v1127 = vunpack.c.l.b16 %v990
          %v1128 = vunpack.c.l.b16 %v991
          %v1129 = vunpack.c.l.b16 %v992
          %v1130 = vunpack.c.l.b16 %v993
          %v1131 = vunpack.c.l.b16 %v994
          %v1132 = vunpack.c.l.b16 %v995
          %v1133 = vunpack.c.l.b16 %v996
          %v1134 = vunpack.c.l.b16 %v997
          %v1135 = vunpack.c.l.b16 %v998
          %v1136 = vpack.c.b16 %v1121, %v1120
          %v1137 = vpack.c.b16 %v1123, %v1122
          %v1138 = vpack.c.b16 %v1125, %v1124
          %v1139 = vpack.c.b16 %v1127, %v1126
          %v1140 = vpack.c.b16 %v1129, %v1128
          %v1141 = vpack.c.b16 %v1131, %v1130
          %v1142 = vpack.c.b16 %v1133, %v1132
          %v1143 = vpack.c.b16 %v1135, %v1134
          %1152 = vmatprep.subr.bf16.mxu0 0
          %1153 = vmatpush1.bf16.msra.mxu0 %v1143
          %1154 = vmatprep.subr.bf16.mxu0 0
          %1155 = vmatpush1.bf16.msra.mxu0 %v1142
          %1156 = vmatprep.subr.bf16.mxu0 0
          %1157 = vmatpush1.bf16.msra.mxu0 %v1141
          %1158 = vmatprep.subr.bf16.mxu0 0
          %1159 = vmatpush1.bf16.msra.mxu0 %v1140
          %1160 = vmatprep.subr.bf16.mxu0 0
          %1161 = vmatpush1.bf16.msra.mxu0 %v1139
          %1162 = vmatprep.subr.bf16.mxu0 0
          %1163 = vmatpush1.bf16.msra.mxu0 %v1138
          %1164 = vmatprep.subr.bf16.mxu0 0
          %1165 = vmatpush1.bf16.msra.mxu0 %v1137
          %1166 = vmatprep.subr.bf16.mxu0 0
          %1167 = vmatpush1.bf16.msra.mxu0 %v1136
          %1168 = vmatprep.subr.bf16.mxu0 0
          %1169 = vmatpush2.bf16.msra.mxu0 0
          %1170 = vmatprep.subr.bf16.mxu0 0
          %1171 = vmatpush2.bf16.msra.mxu0 0
          %1172 = vmatprep.subr.bf16.mxu0 0
          %1173 = vmatpush2.bf16.msra.mxu0 0
          %1174 = vmatprep.subr.bf16.mxu0 0
          %1175 = vmatpush2.bf16.msra.mxu0 0
          %1176 = vmatprep.subr.bf16.mxu0 0
          %1177 = vmatpush2.bf16.msra.mxu0 0
          %1178 = vmatprep.subr.bf16.mxu0 0
          %1179 = vmatpush2.bf16.msra.mxu0 0
          %1180 = vmatprep.subr.bf16.mxu0 0
          %1181 = vmatpush2.bf16.msra.mxu0 0
          %1182 = vmatprep.subr.bf16.mxu0 0
          %1183 = vmatpush2.bf16.msra.mxu0 0
          %1184 = vmatprep.mubr.bf16.mxu0 0
          %1185 = vmatmul.mubr.bf16.gmra.mxu0 %v982
          %v1186 = vpop.f32.mrf.mxu0
          %v1187 = vadd.f32 %v1099, %v1186
          %v1188 = vpop.f32.mrf.mxu0
          %v1189 = vpop.f32.mrf.mxu0
          %v1190 = vpop.f32.mrf.mxu0
          %1191 = vdwg.mxu0
          %v1192 = vtanh.pop %v1187
          %v1193 = vmul.f32 %v1192, 0.01
          %v1194 = vadd.f32 %v981, %v1193
          %1195 = vst [vmem:[%s6] sm:$0xff] %v1194
        $region72: #{euler_reservoir_cell.1} parent=43 // pred_fallthru
          _
        // Predicated region
        $region73: #{euler_reservoir_cell.1} parent=43 // pred_check
          %p1196 = pneg %p171
        $region74: #{euler_reservoir_cell.1} parent=43 // pred_check_branch
          %1198 = sbr.rel (%p1196) target = $region76
        $region75: #{euler_reservoir_cell.1} parent=43 // pred_region
          _
        $region76: #{euler_reservoir_cell.1} parent=43 // pred_fallthru
          _
        // Predicated region
        $region77: #{euler_reservoir_cell.1} parent=43 // pred_check
          %p1199 = pneg %p171
        $region78: #{euler_reservoir_cell.1} parent=43 // pred_check_branch
          %1201 = sbr.rel (%p1199) target = $region80
        $region79: #{euler_reservoir_cell.1} parent=43 // pred_region
          _
        $region80: #{euler_reservoir_cell.1} parent=43 // pred_fallthru
          _
      $region44: #{euler_reservoir_cell.1} parent=5 // pred_fallthru
        _
      %p1202 = scmp.le.s32.totalorder 2, %s17
      // Predicated region
      $region81: #{euler_reservoir_cell.1} parent=5 // pred_check
        %p1203 = pneg %p1202
      $region82: #{euler_reservoir_cell.1} parent=5 // pred_check_branch
        %1205 = sbr.rel (%p1203) target = $region84
      $region83: #{euler_reservoir_cell.1} parent=5 // pred_region
        %s1206 = ssub.s32 %s17, 2
      $region84: #{euler_reservoir_cell.1} parent=5 // pred_fallthru
        _
    $region6: #{euler_reservoir_cell.1} parent=1 // loop_footer
      %s21 = sadd.s32 1, %s17
    $region7: #{euler_reservoir_cell.1} parent=1 // loop_footer_branch
      %16 = sbr.rel target = $region3
    $region8: #{euler_reservoir_cell.1} parent=1 // loop_exit
      _
    %1207 = vsyncpa [#allocation3], 1
    %s1208 = scalar_lea.sflag [#allocation3], 1
    %1209 = vsyncpa %s1208, 1
    %1210 = vsyncpa [#allocation5], 1
    %1211 = vsyncpa [#allocation9], 1

</llo_original>
